<compile_context>
chip_gen: v7x
topology: tpu7x:2x2x1
jax: 0.10.0
libtpu: 0.0.40
codegen_flags: <defaults>
</compile_context>

<pallas_src>
import functools
import math

import jax
import jax.numpy as jnp
from jax import lax
from jax.experimental import pallas as pl
from jax.experimental.pallas import tpu as pltpu

ALPHA = 0.2          # opt.alpha (LeakyReLU negative slope)
LANE = 128
SUBLANE = 8
NEG_INF = -9e15


def _round_up(x, m):
    return ((x + m - 1) // m) * m


def _pad_to(x, shape, dtype=None):
    """Single cast + single pad (no chained per-axis HBM copies)."""
    if dtype is not None and x.dtype != dtype:
        x = x.astype(dtype)
    widths = [(0, t - s) for s, t in zip(x.shape, shape)]
    if any(w[1] for w in widths):
        x = jnp.pad(x, widths)
    return x


def _vmem_limit_bytes():
    """Generation-aware scoped VMEM cap: ~96 MiB on v5e/v6e, ~48 MiB on v7x."""
    cap = 64 * 1024 * 1024        # safe fallback (v7x per-TC capacity)
    try:
        info = pltpu.get_tpu_info()
        cap = int(getattr(info, "vmem_capacity_bytes", cap))
    except Exception:
        pass
    return max(32 * 1024 * 1024, (cap * 3) // 4)


def _pick_tb(B, per_batch_bytes, fixed_bytes, vmem_limit):
    """Batch elements per grid step: fill ~60% of the VMEM budget, but keep
    >= 4 grid steps when B permits (>= 2 steps per v7x TensorCore so each core
    retains double-buffered prefetch/compute overlap)."""
    budget = int(vmem_limit * 0.6)
    avail = max(budget - fixed_bytes, per_batch_bytes)
    tb = max(1, min(B, avail // per_batch_bytes))
    if B >= 4:
        tb = min(tb, max(1, B // 4))
    return int(max(1, tb))


# ----------------------------------------------------------------------------
# LocalAggregator kernel (GCE-GNN): edge-typed graph attention, TB batches per
# grid step.
#   e_k[i,j] = leakyrelu( sum_d h[i,d]*h[j,d]*a_k[d] )
#   att = softmax( select e_k by adj type, -9e15 elsewhere )
#   out = att @ h
# ----------------------------------------------------------------------------
def local_agg_kernel(h_ref, adj_ref, a_ref, out_ref, *, alpha, fuse_logits):
    h_bf = h_ref[...]                       # (TB, NP, DP) bf16
    adj = adj_ref[...].astype(jnp.int32)    # (TB, NP, NP) int8 -> int32
    tb, n, dp = h_bf.shape
    a_bf = a_ref[...]                       # (4, DP) bf16

    att = jnp.full(adj.shape, NEG_INF, jnp.float32)
    if fuse_logits:
        # All 4 edge types in one batched MXU matmul: stack (h * a_k) along the
        # sublane axis via broadcast + tile-aligned reshape (no concat copies).
        hs = (h_bf[:, None, :, :] * a_bf[None, :, None, :]).reshape(tb, 4 * n, dp)
        e = lax.dot_general(hs, h_bf, (((2,), (2,)), ((0,), (0,))),
                            preferred_element_type=jnp.float32)   # (TB, 4N, N)
        e = jnp.maximum(e, alpha * e)                              # leaky relu
        for k in range(4):
            att = jnp.where(adj == k + 1, e[:, k * n:(k + 1) * n, :], att)
    else:
        # Large-graph path: only one (TB, NP, NP) f32 logit temp live at once.
        for k in range(4):
            hk = h_bf * a_bf[k:k + 1, :]
            ek = lax.dot_general(hk, h_bf, (((2,), (2,)), ((0,), (0,))),
                                 preferred_element_type=jnp.float32)
            ek = jnp.maximum(ek, alpha * ek)
            att = jnp.where(adj == k + 1, ek, att)

    # Softmax in f32 (mask value would saturate bf16); approx reciprocal on EUP.
    att = jnp.exp(att - jnp.max(att, axis=-1, keepdims=True))
    att = att * pl.reciprocal(jnp.sum(att, axis=-1, keepdims=True), approx=True)

    out = lax.dot_general(att.astype(jnp.bfloat16), h_bf,
                          (((2,), (1,)), ((0,), (0,))),
                          preferred_element_type=jnp.float32)      # (TB, N, DP)
    # TODO(synk): emit bf16 here if downstream scoring consumes bf16.
    out_ref[...] = out.astype(out_ref.dtype)


def local_aggregator(h, adj, a_stack, alpha=ALPHA):
    B, N, D = h.shape
    NP = _round_up(N, SUBLANE)
    DP = _round_up(D, LANE)               # lane-dense hidden / output
    fuse_logits = NP <= 512               # fused 4N-row logits only when safe

    vmem_limit = _vmem_limit_bytes()
    n_types = 4 if fuse_logits else 1
    per_b = (
        2 * NP * DP * 2            # h bf16 block (double-buffered)
        + 2 * NP * DP * 4          # out f32 block (double-buffered)
        + 2 * NP * NP * 1          # adj int8 block (double-buffered)
        + NP * NP * 4              # adj int32 in-kernel copy
        + n_types * NP * DP * 2    # hs bf16 temp
        + n_types * NP * NP * 4    # logits f32 temp(s)
        + 4 * NP * NP * 4          # att / exp / softmax f32 temps
        + NP * NP * 2              # att bf16
        + 2 * NP * DP * 4          # out f32 temp
    )
    fixed = 2 * 4 * DP * 4
    TB = _pick_tb(B, per_b, fixed, vmem_limit)
    BP = _round_up(B, TB)

    hp = _pad_to(h, (BP, NP, DP), jnp.bfloat16)
    # NOTE: rows with no edge at all softmax to uniform attention; if N is
    # padded (N % 8 != 0) such degenerate rows average over NP instead of N
    # columns (they are padding rows in practice).
    adjp = _pad_to(adj, (BP, NP, NP), jnp.int8)        # values 0..4 fit int8
    ap = _pad_to(a_stack, (4, DP), jnp.bfloat16)

    out = pl.pallas_call(
        functools.partial(local_agg_kernel, alpha=alpha, fuse_logits=fuse_logits),
        out_shape=jax.ShapeDtypeStruct((BP, NP, DP), jnp.float32),
        grid=(BP // TB,),
        in_specs=[
            pl.BlockSpec((TB, NP, DP), lambda b: (b, 0, 0)),
            pl.BlockSpec((TB, NP, NP), lambda b: (b, 0, 0)),
            pl.BlockSpec((4, DP), lambda b: (0, 0)),
        ],
        out_specs=pl.BlockSpec((TB, NP, DP), lambda b: (b, 0, 0)),
        compiler_params=pltpu.CompilerParams(
            dimension_semantics=("parallel",),
            vmem_limit_bytes=vmem_limit),
    )(hp, adjp, ap)
    return out[:B, :N, :D]


# ----------------------------------------------------------------------------
# SR-GNN gated GNN cell kernel (one step, TB batches per grid point).
# Weights pre-stacked host-side into three wide GEMM operands:
#   w_edge (DP, 2DP)  = [W_in | W_out]
#   w_gi   (2DP, 3DP) = [[W_ih_in(r,i,n)], [W_ih_out(r,i,n)]]
#   w_gh   (DP, 3DP)  = W_hh(r,i,n)
#   b_edge (1, 2DP), b_gi (1, 3DP) (b_iah/b_oah folded), b_gh (1, 3DP)
# ----------------------------------------------------------------------------
def gnn_cell_kernel(a_in_ref, a_out_ref, h_ref, w_edge_ref, b_edge_ref,
                    w_gi_ref, w_gh_ref, b_gi_ref, b_gh_ref, out_ref):
    h3 = h_ref[...]                        # (TB, NP, DP) f32
    tb, n, dp = h3.shape
    h2 = h3.reshape(tb * n, dp)            # tile-aligned merge (vreg no-op)
    h2_bf = h2.astype(jnp.bfloat16)

    def mm(x_bf, w_bf):                    # (R, K) @ (K, C) -> f32
        return lax.dot_general(x_bf, w_bf, (((1,), (0,)), ((), ())),
                               preferred_element_type=jnp.float32)

    def bmm(a_bf, x_bf):                   # (TB, N, N) @ (TB, N, DP) -> f32
        return lax.dot_general(a_bf, x_bf, (((2,), (1,)), ((0,), (0,))),
                               preferred_element_type=jnp.float32)

    # Fused edge-typed linear transforms: one (K=DP, N=2DP) GEMM.
    e_both = mm(h2_bf, w_edge_ref[...]) + b_edge_ref[...]          # (R, 2DP)
    ein = e_both[:, :dp].reshape(tb, n, dp).astype(jnp.bfloat16)
    eout = e_both[:, dp:].reshape(tb, n, dp).astype(jnp.bfloat16)

    # Per-batch adjacency aggregation (incoming / outgoing halves).
    iin = bmm(a_in_ref[...], ein).reshape(tb * n, dp).astype(jnp.bfloat16)
    iout = bmm(a_out_ref[...], eout).reshape(tb * n, dp).astype(jnp.bfloat16)
    i_cat = jnp.concatenate([iin, iout], axis=-1)                  # (R, 2DP) bf16

    # Fused GRU gate GEMMs: (K=2DP, N=3DP) and (K=DP, N=3DP).
    gi = mm(i_cat, w_gi_ref[...]) + b_gi_ref[...]                  # (R, 3DP) f32
    gh = mm(h2_bf, w_gh_ref[...]) + b_gh_ref[...]                  # (R, 3DP) f32

    # Gate slices are at DP-multiple lane offsets (free, DP % 128 == 0);
    # gates consumed immediately to limit live f32 temps.
    resetgate = jax.nn.sigmoid(gi[:, :dp] + gh[:, :dp])
    newgate = jnp.tanh(gi[:, 2 * dp:] + resetgate * gh[:, 2 * dp:])
    inputgate = jax.nn.sigmoid(gi[:, dp:2 * dp] + gh[:, dp:2 * dp])
    hy = newgate + inputgate * (h2 - newgate)
    out_ref[...] = hy.reshape(tb, n, dp).astype(out_ref.dtype)


def _prep_gnn_params(p, D, DP):
    w_ih_T = p['w_ih_T']        # (2D, 3D)
    w_hh_T = p['w_hh_T']        # (D, 3D)
    # Fold b_iah / b_oah into the gate-input bias (valid: they are added after
    # the A @ (...) matmul, i.e. constant per row).
    b_gi_fold = p['b_ih'] + p['b_iah'] @ w_ih_T[:D] + p['b_oah'] @ w_ih_T[D:]  # (1, 3D)

    pad2 = lambda w, r, c: jnp.pad(w, ((0, r - w.shape[0]), (0, c - w.shape[1])))
    gcol = lambda w, g: w[:, g * D:(g + 1) * D]

    w_edge = jnp.concatenate(
        [pad2(p['w_in_T'], DP, DP), pad2(p['w_out_T'], DP, DP)],
        axis=1).astype(jnp.bfloat16)                                    # (DP, 2DP)
    b_edge = jnp.concatenate(
        [pad2(p['b_in'], 1, DP), pad2(p['b_out'], 1, DP)],
        axis=1).astype(jnp.float32)                                     # (1, 2DP)

    w_gi_top = jnp.concatenate([pad2(gcol(w_ih_T[:D], g), DP, DP) for g in range(3)], axis=1)
    w_gi_bot = jnp.concatenate([pad2(gcol(w_ih_T[D:], g), DP, DP) for g in range(3)], axis=1)
    w_gi = jnp.concatenate([w_gi_top, w_gi_bot], axis=0).astype(jnp.bfloat16)   # (2DP, 3DP)

    w_gh = jnp.concatenate([pad2(gcol(w_hh_T, g), DP, DP) for g in range(3)],
                           axis=1).astype(jnp.bfloat16)                 # (DP, 3DP)
    b_gi = jnp.concatenate([pad2(gcol(b_gi_fold, g), 1, DP) for g in range(3)],
                           axis=1).astype(jnp.float32)                  # (1, 3DP)
    b_gh = jnp.concatenate([pad2(gcol(p['b_hh'], g), 1, DP) for g in range(3)],
                           axis=1).astype(jnp.float32)                  # (1, 3DP)
    return w_edge, b_edge, w_gi, w_gh, b_gi, b_gh


def gnn_cell(A, h, p):
    B, N, D = h.shape
    NP = _round_up(N, SUBLANE)
    DP = _round_up(D, LANE)

    vmem_limit = _vmem_limit_bytes()
    per_b = (
        2 * 2 * NP * NP * 2        # A_in + A_out bf16 blocks (double-buffered)
        + 2 * NP * DP * 4          # h block
        + 2 * NP * DP * 4          # out block
        + NP * DP * 66             # in-kernel temps (e_both, ein/eout, iin/iout,
                                   #  i_cat, gi, gh, gate epilogue)
    )
    # TODO(synk): mark the weight BlockSpecs with pipeline_mode=pl.Buffered(1)
    # (grid-invariant, no need to double-buffer) once buffer_count=1 is safe.
    fixed = (DP * 2 * DP + 2 * DP * 3 * DP + DP * 3 * DP) * 2 * 2 \
            + (2 * DP + 3 * DP + 3 * DP) * 4 * 2
    TB = _pick_tb(B, per_b, fixed, vmem_limit)
    BP = _round_up(B, TB)

    w_edge, b_edge, w_gi, w_gh, b_gi, b_gh = _prep_gnn_params(p, D, DP)

    # Split the SR-GNN adjacency into incoming/outgoing halves on the host and
    # ship as bf16 (halves HBM->VMEM bytes; it feeds the MXU anyway).
    A_in = _pad_to(A[:, :, :N], (BP, NP, NP), jnp.bfloat16)
    A_out = _pad_to(A[:, :, N:], (BP, NP, NP), jnp.bfloat16)
    hp = _pad_to(h, (BP, NP, DP), jnp.float32)

    out = pl.pallas_call(
        gnn_cell_kernel,
        out_shape=jax.ShapeDtypeStruct((BP, NP, DP), jnp.float32),
        grid=(BP // TB,),
        in_specs=[
            pl.BlockSpec((TB, NP, NP), lambda b: (b, 0, 0)),
            pl.BlockSpec((TB, NP, NP), lambda b: (b, 0, 0)),
            pl.BlockSpec((TB, NP, DP), lambda b: (b, 0, 0)),
            pl.BlockSpec((DP, 2 * DP), lambda b: (0, 0)),
            pl.BlockSpec((1, 2 * DP), lambda b: (0, 0)),
            pl.BlockSpec((2 * DP, 3 * DP), lambda b: (0, 0)),
            pl.BlockSpec((DP, 3 * DP), lambda b: (0, 0)),
            pl.BlockSpec((1, 3 * DP), lambda b: (0, 0)),
            pl.BlockSpec((1, 3 * DP), lambda b: (0, 0)),
        ],
        out_specs=pl.BlockSpec((TB, NP, DP), lambda b: (b, 0, 0)),
        compiler_params=pltpu.CompilerParams(
            dimension_semantics=("parallel",),
            vmem_limit_bytes=vmem_limit),
    )(A_in, A_out, hp, w_edge, b_edge, w_gi, w_gh, b_gi, b_gh)
    return out[:B, :N, :D]


# ----------------------------------------------------------------------------
# CombineGraph.forward: embedding lookups (glue JAX) + Pallas hot paths.
# ----------------------------------------------------------------------------
def combine_graph_forward(params, inputs, adj, mask_item, item, items_ID,
                          adj_ID, total_items, total_adj):
    emb = params['embedding']
    # TODO(synk): move these gathers into the kernels via scalar-prefetched
    # index tensors (PrefetchScalarGridSpec + pl.Element row gather) to cut the
    # extra HBM round trips of gather -> pad -> kernel read.
    hidden1 = jnp.take(emb, inputs, axis=0)        # (B, N, D)
    hidden2 = jnp.take(emb, items_ID, axis=0)      # (B, N, D)
    hidden_mix = jnp.take(emb, total_items, axis=0)

    hidden1 = local_aggregator(hidden1, adj, params['local1_a'])
    hidden2 = gnn_cell(adj_ID, hidden2, params['gnn'])
    hidden_mix = local_aggregator(hidden_mix, total_adj, params['local_mix_a'])

    # TODO(synk): F.dropout(p, training=True) needs an RNG stream; in eval mode
    # (training=False) it is the identity, which is what we implement here.
    return hidden1, hidden2, hidden_mix


# ----------------------------------------------------------------------------
# Pure-JAX (f32) reference for verification.
# ----------------------------------------------------------------------------
def ref_local_agg(h, adj, a, alpha=ALPHA):
    e = jnp.einsum('bnd,kd,bmd->kbnm', h, a, h)
    e = jnp.where(e > 0, e, alpha * e)
    neg = jnp.full_like(e[0], NEG_INF)
    att = jnp.where(adj == 1, e[0], neg)
    att = jnp.where(adj == 2, e[1], att)
    att = jnp.where(adj == 3, e[2], att)
    att = jnp.where(adj == 4, e[3], att)
    att = jax.nn.softmax(att, axis=-1)
    return att @ h


def ref_gnn(A, h, p):
    N, D = h.shape[1], h.shape[2]
    ein = h @ p['w_in_T'] + p['b_in']
    eout = h @ p['w_out_T'] + p['b_out']
    input_in = A[:, :, :N] @ ein + p['b_iah']
    input_out = A[:, :, N:] @ eout + p['b_oah']
    inputs = jnp.concatenate([input_in, input_out], -1)
    gi = inputs @ p['w_ih_T'] + p['b_ih']
    gh = h @ p['w_hh_T'] + p['b_hh']
    i_r, i_i, i_n = gi[..., :D], gi[..., D:2 * D], gi[..., 2 * D:]
    h_r, h_i, h_n = gh[..., :D], gh[..., D:2 * D], gh[..., 2 * D:]
    r = jax.nn.sigmoid(i_r + h_r)
    z = jax.nn.sigmoid(i_i + h_i)
    n = jnp.tanh(i_n + r * h_n)
    return n + z * (h - n)


if __name__ == "__main__":
    B, N, D = 2, 8, 32          # batch, seq_len, hiddenSize
    num_total, n_category = 50, 5
    stdv = 1.0 / math.sqrt(D)

    key = jax.random.PRNGKey(0)
    keys = jax.random.split(key, 20)
    u = lambda k, shape: jax.random.uniform(k, shape, jnp.float32, -stdv, stdv)

    params = {
        'embedding': u(keys[0], (num_total, D)),
        'local1_a': u(keys[1], (4, D)),        # local_agg_1.{a_0..a_3}
        'local_mix_a': u(keys[2], (4, D)),     # local_agg_mix_1.{a_0..a_3}
        'gnn': {
            'w_in_T': u(keys[3], (D, D)),  'b_in': u(keys[4], (1, D)),
            'w_out_T': u(keys[5], (D, D)), 'b_out': u(keys[6], (1, D)),
            'b_iah': u(keys[7], (1, D)),   'b_oah': u(keys[8], (1, D)),
            'w_ih_T': u(keys[9], (2 * D, 3 * D)), 'b_ih': u(keys[10], (1, 3 * D)),
            'w_hh_T': u(keys[11], (D, 3 * D)),    'b_hh': u(keys[12], (1, 3 * D)),
        },
    }

    inputs = jax.random.randint(keys[13], (B, N), 1, num_total - n_category)
    items_ID = jax.random.randint(keys[14], (B, N), 1, num_total)
    total_items = jax.random.randint(keys[15], (B, N), 1, num_total)
    adj = jax.random.randint(keys[16], (B, N, N), 0, 5)
    total_adj = jax.random.randint(keys[17], (B, N, N), 0, 5)
    adj_ID = jax.random.uniform(keys[18], (B, N, 2 * N), jnp.float32, 0.0, 1.0)
    mask_item = jnp.ones((B, N), jnp.int32)
    item = inputs

    h1, h2, hmix = combine_graph_forward(
        params, inputs, adj, mask_item, item, items_ID, adj_ID,
        total_items, total_adj)
    jax.block_until_ready((h1, h2, hmix))

    # Verify against pure-f32 reference; the kernels use bf16 MXU operands and
    # an approximate EUP reciprocal, hence the relaxed tolerance.
    emb = params['embedding']
    r1 = ref_local_agg(jnp.take(emb, inputs, 0), adj, params['local1_a'])
    r2 = ref_gnn(adj_ID, jnp.take(emb, items_ID, 0), params['gnn'])
    rmix = ref_local_agg(jnp.take(emb, total_items, 0), total_adj,
                         params['local_mix_a'])
    assert jnp.allclose(h1, r1, atol=5e-2), float(jnp.max(jnp.abs(h1 - r1)))
    assert jnp.allclose(h2, r2, atol=5e-2), float(jnp.max(jnp.abs(h2 - r2)))
    assert jnp.allclose(hmix, rmix, atol=5e-2), float(jnp.max(jnp.abs(hmix - rmix)))

    print("KERNEL_OK")
</pallas_src>

<mosaic_0001>
module attributes {stable_mosaic.version = 11 : i64} {
  func.func @local_agg_kernel(%arg0: i32, %arg1: memref<2x8x128xbf16, #tpu.memory_space<vmem>>, %arg2: memref<2x8x8xi8, #tpu.memory_space<vmem>>, %arg3: memref<4x128xbf16, #tpu.memory_space<vmem>>, %arg4: memref<2x8x128xf32, #tpu.memory_space<vmem>>) attributes {dimension_semantics = [#tpu.dimension_semantics<parallel>], iteration_bounds = array<i64: 1>, scalar_prefetch = 0 : i64, scratch_operands = 0 : i64, tpu.core_type = #tpu.core_type<tc>, window_params = [{transform_indices = @transform_0, window_bounds = array<i64: 2, 8, 128>}, {transform_indices = @transform_1, window_bounds = array<i64: 2, 8, 8>}, {pipeline_mode = #tpu.pipeline_mode<synchronous>, transform_indices = @transform_2, window_bounds = array<i64: 4, 128>}, {transform_indices = @transform_3, window_bounds = array<i64: 2, 8, 128>}]} {
    %c0 = arith.constant 0 : index
    %c0_0 = arith.constant 0 : index
    %c0_1 = arith.constant 0 : index
    %0 = vector.load %arg1[%c0, %c0_0, %c0_1] : memref<2x8x128xbf16, #tpu.memory_space<vmem>>, vector<2x8x128xbf16>
    %c0_2 = arith.constant 0 : index
    %c0_3 = arith.constant 0 : index
    %c0_4 = arith.constant 0 : index
    %1 = vector.load %arg2[%c0_2, %c0_3, %c0_4] : memref<2x8x8xi8, #tpu.memory_space<vmem>>, vector<2x8x8xi8>
    %2 = arith.extsi %1 : vector<2x8x8xi8> to vector<2x8x8xi32>
    %c0_5 = arith.constant 0 : index
    %c0_6 = arith.constant 0 : index
    %3 = vector.load %arg3[%c0_5, %c0_6] : memref<4x128xbf16, #tpu.memory_space<vmem>>, vector<4x128xbf16>
    %cst = arith.constant -9.000000e+15 : f32
    %4 = vector.broadcast %cst : f32 to vector<2x8x8xf32>
    %5 = vector.shape_cast %0 : vector<2x8x128xbf16> to vector<2x1x8x128xbf16>
    %6 = vector.shape_cast %3 : vector<4x128xbf16> to vector<1x4x1x128xbf16>
    %7 = vector.broadcast %5 : vector<2x1x8x128xbf16> to vector<2x4x8x128xbf16>
    %8 = vector.broadcast %6 : vector<1x4x1x128xbf16> to vector<2x4x8x128xbf16>
    %9 = arith.mulf %7, %8 : vector<2x4x8x128xbf16>
    %10 = vector.shape_cast %9 : vector<2x4x8x128xbf16> to vector<2x32x128xbf16>
    %cst_7 = arith.constant dense<0.000000e+00> : vector<2x32x8xf32>
    %11 = tpu.matmul %10, %0, %cst_7 {dimension_numbers = #tpu.dot_dimension_numbers<[2], [2], [1], [1], [0, 0, 0, 1, 1, 1], [0], [0]>} : vector<2x32x128xbf16>, vector<2x8x128xbf16>, vector<2x32x8xf32> -> vector<2x32x8xf32>
    %cst_8 = arith.constant 2.000000e-01 : f32
    %12 = vector.broadcast %cst_8 : f32 to vector<2x32x8xf32>
    %13 = arith.mulf %12, %11 : vector<2x32x8xf32>
    %14 = arith.maximumf %11, %13 : vector<2x32x8xf32>
    %c1_i32 = arith.constant 1 : i32
    %15 = vector.broadcast %c1_i32 : i32 to vector<2x8x8xi32>
    %16 = arith.cmpi eq, %2, %15 : vector<2x8x8xi32>
    %17 = vector.extract_strided_slice %14 {offsets = [0, 0, 0], sizes = [2, 8, 8], strides = [1, 1, 1]} : vector<2x32x8xf32> to vector<2x8x8xf32>
    %18 = arith.select %16, %17, %4 : vector<2x8x8xi1>, vector<2x8x8xf32>
    %c2_i32 = arith.constant 2 : i32
    %19 = vector.broadcast %c2_i32 : i32 to vector<2x8x8xi32>
    %20 = arith.cmpi eq, %2, %19 : vector<2x8x8xi32>
    %21 = vector.extract_strided_slice %14 {offsets = [0, 8, 0], sizes = [2, 8, 8], strides = [1, 1, 1]} : vector<2x32x8xf32> to vector<2x8x8xf32>
    %22 = arith.select %20, %21, %18 : vector<2x8x8xi1>, vector<2x8x8xf32>
    %c3_i32 = arith.constant 3 : i32
    %23 = vector.broadcast %c3_i32 : i32 to vector<2x8x8xi32>
    %24 = arith.cmpi eq, %2, %23 : vector<2x8x8xi32>
    %25 = vector.extract_strided_slice %14 {offsets = [0, 16, 0], sizes = [2, 8, 8], strides = [1, 1, 1]} : vector<2x32x8xf32> to vector<2x8x8xf32>
    %26 = arith.select %24, %25, %22 : vector<2x8x8xi1>, vector<2x8x8xf32>
    %c4_i32 = arith.constant 4 : i32
    %27 = vector.broadcast %c4_i32 : i32 to vector<2x8x8xi32>
    %28 = arith.cmpi eq, %2, %27 : vector<2x8x8xi32>
    %29 = vector.extract_strided_slice %14 {offsets = [0, 24, 0], sizes = [2, 8, 8], strides = [1, 1, 1]} : vector<2x32x8xf32> to vector<2x8x8xf32>
    %30 = arith.select %28, %29, %26 : vector<2x8x8xi1>, vector<2x8x8xf32>
    %cst_9 = arith.constant dense<0xFF800000> : vector<2x8xf32>
    %31 = vector.multi_reduction <maximumf>, %30, %cst_9 [2] : vector<2x8x8xf32> to vector<2x8xf32>
    %32 = vector.shape_cast %31 : vector<2x8xf32> to vector<2x8x1xf32>
    %33 = vector.broadcast %32 : vector<2x8x1xf32> to vector<2x8x8xf32>
    %34 = arith.subf %30, %33 : vector<2x8x8xf32>
    %35 = math.exp %34 : vector<2x8x8xf32>
    %cst_10 = arith.constant dense<0.000000e+00> : vector<2x8xf32>
    %36 = vector.multi_reduction <add>, %35, %cst_10 [2] : vector<2x8x8xf32> to vector<2x8xf32>
    %37 = vector.shape_cast %36 : vector<2x8xf32> to vector<2x8x1xf32>
    %38 = tpu.reciprocal %37 {approx = true} : vector<2x8x1xf32> -> vector<2x8x1xf32>
    %39 = vector.broadcast %38 : vector<2x8x1xf32> to vector<2x8x8xf32>
    %40 = arith.mulf %35, %39 : vector<2x8x8xf32>
    %41 = arith.truncf %40 : vector<2x8x8xf32> to vector<2x8x8xbf16>
    %cst_11 = arith.constant dense<0.000000e+00> : vector<2x8x128xf32>
    %42 = tpu.matmul %41, %0, %cst_11 {dimension_numbers = #tpu.dot_dimension_numbers<[2], [1], [1], [2], [0, 0, 0, 1, 1, 2], [0], [0]>} : vector<2x8x8xbf16>, vector<2x8x128xbf16>, vector<2x8x128xf32> -> vector<2x8x128xf32>
    %c0_12 = arith.constant 0 : index
    %c0_13 = arith.constant 0 : index
    %c0_14 = arith.constant 0 : index
    %43 = vector.load %arg4[%c0_12, %c0_13, %c0_14] : memref<2x8x128xf32, #tpu.memory_space<vmem>>, vector<2x8x128xf32>
    tpu.vector_store %arg4[%c0_12, %c0_13, %c0_14], %42 {strides = array<i32>} : memref<2x8x128xf32, #tpu.memory_space<vmem>>, vector<2x8x128xf32>,
    return
  }
  func.func @transform_0(%arg0: i32) -> (i32, i32, i32) {
    %c0_i32 = arith.constant 0 : i32
    %c0_i32_0 = arith.constant 0 : i32
    %c0_i32_1 = arith.constant 0 : i32
    return %arg0, %c0_i32, %c0_i32_0 : i32, i32, i32
  }
  func.func @transform_1(%arg0: i32) -> (i32, i32, i32) {
    %c0_i32 = arith.constant 0 : i32
    %c0_i32_0 = arith.constant 0 : i32
    %c0_i32_1 = arith.constant 0 : i32
    return %arg0, %c0_i32, %c0_i32_0 : i32, i32, i32
  }
  func.func @transform_2(%arg0: i32) -> (i32, i32) {
    %c0_i32 = arith.constant 0 : i32
    %c0_i32_0 = arith.constant 0 : i32
    %c0_i32_1 = arith.constant 0 : i32
    return %c0_i32, %c0_i32_0 : i32, i32
  }
  func.func @transform_3(%arg0: i32) -> (i32, i32, i32) {
    %c0_i32 = arith.constant 0 : i32
    %c0_i32_0 = arith.constant 0 : i32
    %c0_i32_1 = arith.constant 0 : i32
    return %arg0, %c0_i32, %c0_i32_0 : i32, i32, i32
  }
}

</mosaic_0001>

<llo_original>
// kernel: tpu_custom_call.1
$region0: #{tpu_custom_call.1}
  #allocation0 [shape = 'u32[]', space=smem, size = 0x4, offset = 0x4, fixed_abs, tag = 'smem constant byte address 0x4 - core index']
  #allocation1 [shape = 'u32[144,128]{1,0:T(1,128)}', space=vmem, size = 0x12000, scoped, tag = 'internal scratch']
  %s0 = inlined_call_operand.hbm [shape: bf16[2,8,128], index: 0, kind: input, shape index: {}]
  %s1 = inlined_call_operand.hbm [shape: s8[2,8,8], index: 1, kind: input, shape index: {}]
  %s2 = inlined_call_operand.vmem [shape: bf16[4,128], index: 2, kind: input, shape index: {}]
  %s3 = inlined_call_operand.hbm [shape: f32[2,8,128], index: 3, kind: output, shape index: {}]
  %s4 = sld [smem:[#allocation0]]
  $region30: #{tpu_custom_call.1} parent=0
    _
  %s6 = ssub.s32 1, %s4
  %s7 = scalar_select 0, %s6, %s4
  $region1: #{tpu_custom_call.1} parent=0
    #allocation2 [shape = 'u8[4096]{0}', space=vmem, size = 0x1000, scoped, tag = 'input window, operand 0, single buffered']
    #allocation3 [shape = 's32[1]{0}', space=sflag, size = 0x4, scoped, tag = 'scoped memory for tpu_custom_call.1']
    #allocation4 [shape = 's32[1]{0}', space=sflag, size = 0x4, scoped, tag = 'scoped memory for tpu_custom_call.1']
    #allocation5 [shape = 'u8[2048]{0}', space=vmem, size = 0x800, scoped, tag = 'input window, operand 1, single buffered']
    #allocation6 [shape = 's32[1]{0}', space=sflag, size = 0x4, scoped, tag = 'scoped memory for tpu_custom_call.1']
    #allocation7 [shape = 'u8[8192]{0}', space=vmem, size = 0x2000, scoped, tag = 'output window, operand 0, single buffered']
    %8 = vsyncpa [#allocation3], 0
    %9 = vsyncpa [#allocation6], 0
    %10 = vsyncpa [#allocation4], 0
    // Predicated region
    $region2: #{tpu_custom_call.1} parent=1 // pred_check
      _
    $region3: #{tpu_custom_call.1} parent=1 // pred_check_branch
      %12 = sbr.rel (0) target = $region5
    $region4: #{tpu_custom_call.1} parent=1 // pred_region
      %s14 = ssub.s32 128, 128
      %15 = vsyncadd [#allocation3], %s14
      %s16 = sshll.u32 [#allocation2], 4
      %s17 = int_to_ptr.vmem [resolvable:$true] %s16
      %22 = dma.hbm_to_vmem [thread:$0]  %s0, 128, %s17, [#allocation3], 64, 64, 4
    $region5: #{tpu_custom_call.1} parent=1 // pred_fallthru
      _
    // Predicated region
    $region6: #{tpu_custom_call.1} parent=1 // pred_check
      _
    $region7: #{tpu_custom_call.1} parent=1 // pred_check_branch
      %24 = sbr.rel (0) target = $region9
    $region8: #{tpu_custom_call.1} parent=1 // pred_region
      %s26 = ssub.s32 64, 64
      %27 = vsyncadd [#allocation6], %s26
      %s28 = sshll.u32 [#allocation5], 4
      %s29 = int_to_ptr.vmem [resolvable:$true] %s28
      %34 = dma.hbm_to_vmem [thread:$0]  %s1, 64, %s29, [#allocation6], 32, 32, 2
    $region9: #{tpu_custom_call.1} parent=1 // pred_fallthru
      _
    // Predicated region
    $region10: #{tpu_custom_call.1} parent=1 // pred_check
      _
    $region11: #{tpu_custom_call.1} parent=1 // pred_check_branch
      %36 = sbr.rel (0) target = $region13
    $region12: #{tpu_custom_call.1} parent=1 // pred_region
      _
    $region13: #{tpu_custom_call.1} parent=1 // pred_fallthru
      _
    // Predicated region
    $region14: #{tpu_custom_call.1} parent=1 // pred_check
      _
    $region15: #{tpu_custom_call.1} parent=1 // pred_check_branch
      %38 = sbr.rel (0) target = $region17
    $region16: #{tpu_custom_call.1} parent=1 // pred_region
      %39 = dma.done [#allocation3], 128
    $region17: #{tpu_custom_call.1} parent=1 // pred_fallthru
      _
    // Predicated region
    $region18: #{tpu_custom_call.1} parent=1 // pred_check
      _
    $region19: #{tpu_custom_call.1} parent=1 // pred_check_branch
      %41 = sbr.rel (0) target = $region21
    $region20: #{tpu_custom_call.1} parent=1 // pred_region
      %42 = dma.done [#allocation6], 64
    $region21: #{tpu_custom_call.1} parent=1 // pred_fallthru
      _
    %v44 = vld [vmem:[#allocation2] sm:$0xf]
    %v45 = vld [vmem:[#allocation2 + $0x4] sm:$0xf]
    %v46 = vld [vmem:[#allocation5] sm:$0x3]
    %v47 = vld [vmem:[#allocation5 + $0x2] sm:$0x3]
    %v48 = vunpack.c.0.s8 %v46
    %v49 = vunpack.c.0.s8 %v47
    %v50 = vld [vmem:[%s2] sm:$0x3]
    %v53 = vunpack.c.l.s4 1966171168
    %v54 = vunpack.c.0.s8 %v53
    %v55 = vlaneseq
    %v56 = vshrl.u32 %v55, 7
    %v57 = vsub.s32 %v54, %v56
    %v58 = vrot.slane %v50, %v57
    %v59 = vcombine.high %v58, %v58
    %v60 = vunpack.i.l.s16 %v58
    %v61 = vunpack.i.h.s16 %v58
    %v62 = vunpack.i.l.s16 %v59
    %v63 = vunpack.i.h.s16 %v59
    %v64 = vpack.i.b16 %v60, %v60
    %v65 = vpack.i.b16 %v61, %v61
    %v66 = vpack.i.b16 %v62, %v62
    %v67 = vpack.i.b16 %v63, %v63
    %v68 = vlaneseq
    %v69 = vshrl.u32 %v68, 7
    %v70 = vsub.s32 0, %v69
    %v71 = vrot.slane %v64, %v70
    %v72 = vlaneseq
    %v73 = vshrl.u32 %v72, 7
    %v74 = vsub.s32 0, %v73
    %v75 = vrot.slane %v65, %v74
    %v76 = vlaneseq
    %v77 = vshrl.u32 %v76, 7
    %v78 = vsub.s32 0, %v77
    %v79 = vrot.slane %v66, %v78
    %v80 = vlaneseq
    %v81 = vshrl.u32 %v80, 7
    %v82 = vsub.s32 0, %v81
    %v83 = vrot.slane %v67, %v82
    %v85 = vpack.i.b16 %v71, %v71
    %v87 = vlaneseq
    %v88 = vshrl.u32 %v87, 7
    %v89 = vsub.s32 0, %v88
    %v90 = vrot.slane %v85, %v89
    %v92 = vpack.i.b16 %v75, %v75
    %v94 = vlaneseq
    %v95 = vshrl.u32 %v94, 7
    %v96 = vsub.s32 0, %v95
    %v97 = vrot.slane %v92, %v96
    %v99 = vpack.i.b16 %v79, %v79
    %v101 = vlaneseq
    %v102 = vshrl.u32 %v101, 7
    %v103 = vsub.s32 0, %v102
    %v104 = vrot.slane %v99, %v103
    %v106 = vpack.i.b16 %v83, %v83
    %v108 = vlaneseq
    %v109 = vshrl.u32 %v108, 7
    %v110 = vsub.s32 0, %v109
    %v111 = vrot.slane %v106, %v110
    %v112 = vmul.bf16 %v44, %v90
    %v113 = vmul.bf16 %v44, %v97
    %v114 = vmul.bf16 %v44, %v104
    %v115 = vmul.bf16 %v44, %v111
    %v116 = vmul.bf16 %v45, %v90
    %v117 = vmul.bf16 %v45, %v97
    %v118 = vmul.bf16 %v45, %v104
    %v119 = vmul.bf16 %v45, %v111
    %v124 = vunpack.c.l.b16 %v112
    %v125 = vunpack.c.l.b16 %v113
    %v126 = vunpack.c.l.b16 %v114
    %v127 = vunpack.c.l.b16 %v115
    %v128 = vpack.c.b16 %v125, %v124
    %v129 = vpack.c.b16 %v127, %v126
    %132 = vmatprep.subr.bf16.mxu0 0
    %133 = vmatpush1.bf16.xpose.msra.mxu0 %v44
    %134 = vmatprep.subr.bf16.mxu0 0
    %135 = vmatpush1.bf16.xpose.msra.mxu0 0
    %136 = vmatprep.subr.bf16.mxu0 0
    %137 = vmatpush1.bf16.xpose.msra.mxu0 0
    %138 = vmatprep.subr.bf16.mxu0 0
    %139 = vmatpush1.bf16.xpose.msra.mxu0 0
    %140 = vmatprep.subr.bf16.mxu0 0
    %141 = vmatpush1.bf16.xpose.msra.mxu0 0
    %142 = vmatprep.subr.bf16.mxu0 0
    %143 = vmatpush1.bf16.xpose.msra.mxu0 0
    %144 = vmatprep.subr.bf16.mxu0 0
    %145 = vmatpush1.bf16.xpose.msra.mxu0 0
    %146 = vmatprep.subr.bf16.mxu0 0
    %147 = vmatpush1.bf16.xpose.msra.mxu0 0
    %148 = vmatprep.subr.bf16.mxu0 0
    %149 = vmatpush1.bf16.xpose.msra.mxu0 0
    %150 = vmatprep.subr.bf16.mxu0 0
    %151 = vmatpush1.bf16.xpose.msra.mxu0 0
    %152 = vmatprep.subr.bf16.mxu0 0
    %153 = vmatpush1.bf16.xpose.msra.mxu0 0
    %154 = vmatprep.subr.bf16.mxu0 0
    %155 = vmatpush1.bf16.xpose.msra.mxu0 0
    %156 = vmatprep.subr.bf16.mxu0 0
    %157 = vmatpush1.bf16.xpose.msra.mxu0 0
    %158 = vmatprep.subr.bf16.mxu0 0
    %159 = vmatpush1.bf16.xpose.msra.mxu0 0
    %160 = vmatprep.subr.bf16.mxu0 0
    %161 = vmatpush1.bf16.xpose.msra.mxu0 0
    %162 = vmatprep.subr.bf16.mxu0 0
    %163 = vmatpush1.bf16.xpose.msra.mxu0 0
    %164 = vmatprep.mubr.bf16.mxu0 0
    %165 = vmatmul.mubr.bf16.gmra.mrb[0].mxu0 %v128
    %v166 = vpop.f32.mrb[0].mxu0
    %v167 = vadd.f32 0.0, %v166
    %v168 = vpop.f32.mrb[0].mxu0
    %v169 = vpop.f32.mrb[0].mxu0
    %v170 = vadd.f32 0.0, %v169
    %v171 = vpop.f32.mrb[0].mxu0
    %172 = vmatprep.mubr.bf16.mxu0 0
    %173 = vmatmul.mubr.bf16.gmra.mrb[0].mxu0 %v129
    %v174 = vpop.f32.mrb[0].mxu0
    %v175 = vadd.f32 0.0, %v174
    %v176 = vpop.f32.mrb[0].mxu0
    %v177 = vpop.f32.mrb[0].mxu0
    %v178 = vadd.f32 0.0, %v177
    %v179 = vpop.f32.mrb[0].mxu0
    %180 = vdwg.mxu0
    %v185 = vunpack.c.l.b16 %v116
    %v186 = vunpack.c.l.b16 %v117
    %v187 = vunpack.c.l.b16 %v118
    %v188 = vunpack.c.l.b16 %v119
    %v189 = vpack.c.b16 %v186, %v185
    %v190 = vpack.c.b16 %v188, %v187
    %193 = vmatprep.subr.bf16.mxu0 0
    %194 = vmatpush1.bf16.xpose.msra.mxu0 %v45
    %195 = vmatprep.subr.bf16.mxu0 0
    %196 = vmatpush1.bf16.xpose.msra.mxu0 0
    %197 = vmatprep.subr.bf16.mxu0 0
    %198 = vmatpush1.bf16.xpose.msra.mxu0 0
    %199 = vmatprep.subr.bf16.mxu0 0
    %200 = vmatpush1.bf16.xpose.msra.mxu0 0
    %201 = vmatprep.subr.bf16.mxu0 0
    %202 = vmatpush1.bf16.xpose.msra.mxu0 0
    %203 = vmatprep.subr.bf16.mxu0 0
    %204 = vmatpush1.bf16.xpose.msra.mxu0 0
    %205 = vmatprep.subr.bf16.mxu0 0
    %206 = vmatpush1.bf16.xpose.msra.mxu0 0
    %207 = vmatprep.subr.bf16.mxu0 0
    %208 = vmatpush1.bf16.xpose.msra.mxu0 0
    %209 = vmatprep.subr.bf16.mxu0 0
    %210 = vmatpush1.bf16.xpose.msra.mxu0 0
    %211 = vmatprep.subr.bf16.mxu0 0
    %212 = vmatpush1.bf16.xpose.msra.mxu0 0
    %213 = vmatprep.subr.bf16.mxu0 0
    %214 = vmatpush1.bf16.xpose.msra.mxu0 0
    %215 = vmatprep.subr.bf16.mxu0 0
    %216 = vmatpush1.bf16.xpose.msra.mxu0 0
    %217 = vmatprep.subr.bf16.mxu0 0
    %218 = vmatpush1.bf16.xpose.msra.mxu0 0
    %219 = vmatprep.subr.bf16.mxu0 0
    %220 = vmatpush1.bf16.xpose.msra.mxu0 0
    %221 = vmatprep.subr.bf16.mxu0 0
    %222 = vmatpush1.bf16.xpose.msra.mxu0 0
    %223 = vmatprep.subr.bf16.mxu0 0
    %224 = vmatpush1.bf16.xpose.msra.mxu0 0
    %225 = vmatprep.mubr.bf16.mxu0 0
    %226 = vmatmul.mubr.bf16.gmra.mrb[0].mxu0 %v189
    %v227 = vpop.f32.mrb[0].mxu0
    %v228 = vadd.f32 0.0, %v227
    %v229 = vpop.f32.mrb[0].mxu0
    %v230 = vpop.f32.mrb[0].mxu0
    %v231 = vadd.f32 0.0, %v230
    %v232 = vpop.f32.mrb[0].mxu0
    %233 = vmatprep.mubr.bf16.mxu0 0
    %234 = vmatmul.mubr.bf16.gmra.mrb[0].mxu0 %v190
    %v235 = vpop.f32.mrb[0].mxu0
    %v236 = vadd.f32 0.0, %v235
    %v237 = vpop.f32.mrb[0].mxu0
    %v238 = vpop.f32.mrb[0].mxu0
    %v239 = vadd.f32 0.0, %v238
    %v240 = vpop.f32.mrb[0].mxu0
    %241 = vdwg.mxu0
    %v242 = vmul.f32 %v167, 0.2
    %v243 = vmul.f32 %v170, 0.2
    %v244 = vmul.f32 %v175, 0.2
    %v245 = vmul.f32 %v178, 0.2
    %v246 = vmul.f32 %v228, 0.2
    %v247 = vmul.f32 %v231, 0.2
    %v248 = vmul.f32 %v236, 0.2
    %v249 = vmul.f32 %v239, 0.2
    %v250 = vmax.f32 %v167, %v242
    %v251 = vmax.f32 %v170, %v243
    %v252 = vmax.f32 %v175, %v244
    %v253 = vmax.f32 %v178, %v245
    %v254 = vmax.f32 %v228, %v246
    %v255 = vmax.f32 %v231, %v247
    %v256 = vmax.f32 %v236, %v248
    %v257 = vmax.f32 %v239, %v249
    %vm258 = vcmp.eq.s32.totalorder %v48, 1
    %vm259 = vcmp.eq.s32.totalorder %v49, 1
    %v260 = vsel %vm258, %v250, -9e+15
    %v261 = vsel %vm259, %v254, -9e+15
    %vm262 = vcmp.eq.s32.totalorder %v48, 2
    %vm263 = vcmp.eq.s32.totalorder %v49, 2
    %v264 = vsel %vm262, %v251, %v260
    %v265 = vsel %vm263, %v255, %v261
    %vm266 = vcmp.eq.s32.totalorder %v48, 3
    %vm267 = vcmp.eq.s32.totalorder %v49, 3
    %v268 = vsel %vm266, %v252, %v264
    %v269 = vsel %vm267, %v256, %v265
    %vm270 = vcmp.eq.s32.totalorder %v48, 4
    %vm271 = vcmp.eq.s32.totalorder %v49, 4
    %v272 = vsel %vm270, %v253, %v268
    %v273 = vsel %vm271, %v257, %v269
    %vm274 = vcmask 64512
    %v275 = vsel %vm274, %v272, -inf
    %276 = vmax.xlane.f32.xlu0 %v275
    %v277 = vpop.xlane.xlu0 %276
    %v278 = vsel %vm274, %v273, -inf
    %279 = vmax.xlane.f32.xlu0 %v278
    %v280 = vpop.xlane.xlu0 %279
    %v281 = vsub.f32 %v272, %v277
    %v282 = vsub.f32 %v273, %v280
    %v283 = vmul.f32 %v281, 1.442695
    %v284 = vpow.pop %v283
    %v285 = vmul.f32 %v282, 1.442695
    %v286 = vpow.pop %v285
    %v287 = vsel %vm274, %v284, 0.0
    %288 = vadd.xlane.f32.xlu0 %v287
    %v289 = vpop.xlane.xlu0 %288
    %v290 = vsel %vm274, %v286, 0.0
    %291 = vadd.xlane.f32.xlu0 %v290
    %v292 = vpop.xlane.xlu0 %291
    %v293 = vrcp.pop %v289
    %v294 = vrcp.pop %v292
    %v295 = vmul.f32 %v284, %v293
    %v296 = vmul.f32 %v286, %v294
    %v297 = vpack.c.bf16 %v295, %v295
    %v298 = vpack.c.bf16 %v296, %v296
    %v300 = vsel %vm274, %v297, 0
    %vm302 = vcmask 1043456
    %v304 = vsel %vm302, %v44, 0
    %306 = vmatprep.subr.bf16.mxu0 0
    %307 = vmatpush1.bf16.msra.mxu0 %v304
    %308 = vmatprep.subr.bf16.mxu0 0
    %309 = vmatpush1.bf16.msra.mxu0 0
    %310 = vmatprep.subr.bf16.mxu0 0
    %311 = vmatpush1.bf16.msra.mxu0 0
    %312 = vmatprep.subr.bf16.mxu0 0
    %313 = vmatpush1.bf16.msra.mxu0 0
    %314 = vmatprep.subr.bf16.mxu0 0
    %315 = vmatpush1.bf16.msra.mxu0 0
    %316 = vmatprep.subr.bf16.mxu0 0
    %317 = vmatpush1.bf16.msra.mxu0 0
    %318 = vmatprep.subr.bf16.mxu0 0
    %319 = vmatpush1.bf16.msra.mxu0 0
    %320 = vmatprep.subr.bf16.mxu0 0
    %321 = vmatpush1.bf16.msra.mxu0 0
    %322 = vmatprep.subr.bf16.mxu0 0
    %323 = vmatpush1.bf16.msra.mxu0 0
    %324 = vmatprep.subr.bf16.mxu0 0
    %325 = vmatpush1.bf16.msra.mxu0 0
    %326 = vmatprep.subr.bf16.mxu0 0
    %327 = vmatpush1.bf16.msra.mxu0 0
    %328 = vmatprep.subr.bf16.mxu0 0
    %329 = vmatpush1.bf16.msra.mxu0 0
    %330 = vmatprep.subr.bf16.mxu0 0
    %331 = vmatpush1.bf16.msra.mxu0 0
    %332 = vmatprep.subr.bf16.mxu0 0
    %333 = vmatpush1.bf16.msra.mxu0 0
    %334 = vmatprep.subr.bf16.mxu0 0
    %335 = vmatpush1.bf16.msra.mxu0 0
    %336 = vmatprep.subr.bf16.mxu0 0
    %337 = vmatpush1.bf16.msra.mxu0 0
    %338 = vmatprep.mubr.bf16.mxu0 0
    %339 = vmatmul.mubr.bf16.gmra.mrb[0].mxu0 %v300
    %v340 = vpop.f32.mrb[0].mxu0
    %v341 = vadd.f32 0.0, %v340
    %v342 = vpop.f32.mrb[0].mxu0
    %v343 = vpop.f32.mrb[0].mxu0
    %v344 = vpop.f32.mrb[0].mxu0
    %345 = vdwg.mxu0
    %v347 = vsel %vm274, %v298, 0
    %v350 = vsel %vm302, %v45, 0
    %352 = vmatprep.subr.bf16.mxu0 0
    %353 = vmatpush1.bf16.msra.mxu0 %v350
    %354 = vmatprep.subr.bf16.mxu0 0
    %355 = vmatpush1.bf16.msra.mxu0 0
    %356 = vmatprep.subr.bf16.mxu0 0
    %357 = vmatpush1.bf16.msra.mxu0 0
    %358 = vmatprep.subr.bf16.mxu0 0
    %359 = vmatpush1.bf16.msra.mxu0 0
    %360 = vmatprep.subr.bf16.mxu0 0
    %361 = vmatpush1.bf16.msra.mxu0 0
    %362 = vmatprep.subr.bf16.mxu0 0
    %363 = vmatpush1.bf16.msra.mxu0 0
    %364 = vmatprep.subr.bf16.mxu0 0
    %365 = vmatpush1.bf16.msra.mxu0 0
    %366 = vmatprep.subr.bf16.mxu0 0
    %367 = vmatpush1.bf16.msra.mxu0 0
    %368 = vmatprep.subr.bf16.mxu0 0
    %369 = vmatpush1.bf16.msra.mxu0 0
    %370 = vmatprep.subr.bf16.mxu0 0
    %371 = vmatpush1.bf16.msra.mxu0 0
    %372 = vmatprep.subr.bf16.mxu0 0
    %373 = vmatpush1.bf16.msra.mxu0 0
    %374 = vmatprep.subr.bf16.mxu0 0
    %375 = vmatpush1.bf16.msra.mxu0 0
    %376 = vmatprep.subr.bf16.mxu0 0
    %377 = vmatpush1.bf16.msra.mxu0 0
    %378 = vmatprep.subr.bf16.mxu0 0
    %379 = vmatpush1.bf16.msra.mxu0 0
    %380 = vmatprep.subr.bf16.mxu0 0
    %381 = vmatpush1.bf16.msra.mxu0 0
    %382 = vmatprep.subr.bf16.mxu0 0
    %383 = vmatpush1.bf16.msra.mxu0 0
    %384 = vmatprep.mubr.bf16.mxu0 0
    %385 = vmatmul.mubr.bf16.gmra.mrb[0].mxu0 %v347
    %v386 = vpop.f32.mrb[0].mxu0
    %v387 = vadd.f32 0.0, %v386
    %v388 = vpop.f32.mrb[0].mxu0
    %v389 = vpop.f32.mrb[0].mxu0
    %v390 = vpop.f32.mrb[0].mxu0
    %391 = vdwg.mxu0
    %392 = vst [vmem:[#allocation7] sm:$0xff] %v341
    %393 = vst [vmem:[#allocation7 + $0x8] sm:$0xff] %v387
    // Predicated region
    $region22: #{tpu_custom_call.1} parent=1 // pred_check
      _
    $region23: #{tpu_custom_call.1} parent=1 // pred_check_branch
      %395 = sbr.rel (0) target = $region25
    $region24: #{tpu_custom_call.1} parent=1 // pred_region
      %s397 = ssub.s32 256, 256
      %398 = vsyncadd [#allocation4], %s397
      %s399 = sshll.u32 [#allocation7], 4
      %s400 = int_to_ptr.vmem [resolvable:$true] %s399
      %405 = dma.vmem_to_hbm [thread:$0]  %s400, 256, %s3, [#allocation4], 128, 128, 8
    $region25: #{tpu_custom_call.1} parent=1 // pred_fallthru
      _
    // Predicated region
    $region26: #{tpu_custom_call.1} parent=1 // pred_check
      _
    $region27: #{tpu_custom_call.1} parent=1 // pred_check_branch
      %407 = sbr.rel (0) target = $region29
    $region28: #{tpu_custom_call.1} parent=1 // pred_region
      %408 = dma.done [#allocation4], 256
    $region29: #{tpu_custom_call.1} parent=1 // pred_fallthru
      _
    %409 = vsyncpa [#allocation3], 1
    %410 = vsyncpa [#allocation6], 1
    %411 = vsyncpa [#allocation4], 1

</llo_original>
